<compile_context>
chip_gen: v5e
topology: v5e:2x2
jax: 0.10.0
libtpu: 0.0.40
codegen_flags: <defaults>
</compile_context>

<pallas_src>
import functools

import jax
import jax.numpy as jnp
from jax.experimental import pallas as pl
from jax.experimental.pallas import tpu as pltpu

TAU = 0.2
INV_TAU = 1.0 / TAU
EPS = 1e-12  # F.normalize eps


# ----------------------------- device heuristics -----------------------------
def _tpu_generation():
    try:
        kind = jax.devices()[0].device_kind.lower()
    except Exception:
        return None
    for g in ("v7", "v6", "v5"):
        if g in kind:
            return g
    return None


def _budgets():
    gen = _tpu_generation()
    if gen in ("v5", "v6"):
        # 128 MiB physical VMEM: generous scoped limit + h2-residency budget.
        return 96 * 1024 * 1024, 48 * 1024 * 1024, gen
    # v7x (64 MiB physical VMEM) or unknown chip: stay conservative.
    return 40 * 1024 * 1024, 12 * 1024 * 1024, gen


def _pick_tile(n_pad, d, itemsize, budget):
    # Largest tile (MXU-friendly multiples of 128) whose per-step working set
    # (sim + exp internal scratch + double-buffered operand blocks) fits the
    # budget. n_pad is always a multiple of 128, so 128 is a guaranteed fit.
    for t in (1024, 512, 256, 128):
        if n_pad % t:
            continue
        est = t * t * 8 + 4 * t * d * itemsize
        if est <= budget:
            return t
    return 128


# --------------------- pass 1: normalization (+ diagonal) --------------------
def _normalize_kernel(h1_ref, h2_ref, h1o_ref, h2o_ref, diag_ref):
    h1 = h1_ref[...].astype(jnp.float32)
    h2 = h2_ref[...].astype(jnp.float32)
    n1 = jnp.sqrt(jnp.sum(h1 * h1, axis=-1, keepdims=True))
    n2 = jnp.sqrt(jnp.sum(h2 * h2, axis=-1, keepdims=True))
    # F.normalize semantics: x / max(||x||, eps); zero rows (padding) stay zero.
    inv1 = INV_TAU / jnp.maximum(n1, EPS)   # fold 1/tau into branch-1 rows
    inv2 = 1.0 / jnp.maximum(n2, EPS)
    a = h1 * inv1
    b = h2 * inv2
    h1o_ref[...] = a.astype(h1o_ref.dtype)
    h2o_ref[...] = b.astype(h2o_ref.dtype)
    # diag[r] = sim[r, r] (f32), computed here for free under the DMA-bound pass.
    diag_ref[...] = jnp.sum(a * b, axis=-1, keepdims=True)


# ---------------------- pass 2: tiled sum-exp statistics ---------------------
def _contrast_kernel(h1n_ref, h2n_ref, rowsum_ref, colpart_ref, *,
                     tile, h2_resident, exp_dtype):
    j = pl.program_id(1)

    a = h1n_ref[...]                                   # (T, D), scaled by 1/tau
    if h2_resident:
        col0 = pl.multiple_of(j * tile, tile)
        b = h2n_ref[pl.ds(col0, tile), :]              # slice resident h2n
    else:
        b = h2n_ref[...]                               # (T, D)

    # sim tile on the MXU: contract the feature dims directly (no h2.T copy).
    sim = jax.lax.dot_general(
        a, b, dimension_numbers=(((1,), (1,)), ((), ())),
        preferred_element_type=jnp.float32)            # (T, T) f32

    # |sim| <= 1/tau after normalization, so the max-shift-free exp is safe.
    # bf16 exp on v6e/v7x doubles EUP throughput; sums accumulate in f32.
    e = jnp.exp(sim.astype(exp_dtype)).astype(jnp.float32)

    @pl.when(j == 0)
    def _new_row_block():
        rowsum_ref[...] = jnp.zeros_like(rowsum_ref)

    rowsum_ref[...] += jnp.sum(e, axis=1, keepdims=True)          # (T, 1)
    colpart_ref[...] = jnp.sum(e, axis=0, keepdims=True).reshape(
        colpart_ref.shape)                                        # (1, 1, T)


# ---------------------------------- wrapper -----------------------------------
def dual_branch_contrast_l2l(h1, h2, *, compute_dtype=None, exp_dtype=None,
                             tile=None, h2_resident=None):
    """DualBranchContrast (L2L, InfoNCE tau=0.2, no intraview negatives) on TPU."""
    N, D = h1.shape
    assert h2.shape == (N, D)

    vmem_limit, h2_budget, gen = _budgets()
    if compute_dtype is None:
        compute_dtype = jnp.bfloat16           # bf16 MXU operands, f32 accumulation
    if exp_dtype is None:
        exp_dtype = jnp.bfloat16 if gen in ("v6", "v7") else jnp.float32
    itemsize = jnp.dtype(compute_dtype).itemsize

    # Pad to a multiple of 128 (lane width). Padded rows normalize to zero, so
    # they add exactly exp(0)=1 per padded index to each sum-exp; corrected below.
    N_pad = ((N + 127) // 128) * 128
    pad = N_pad - N
    if pad:
        h1 = jnp.pad(h1, ((0, pad), (0, 0)))
        h2 = jnp.pad(h2, ((0, pad), (0, 0)))

    T = tile if tile is not None else _pick_tile(N_pad, D, itemsize, vmem_limit // 2)
    assert N_pad % T == 0 and T % 128 == 0
    nB = N_pad // T

    if h2_resident is None:
        h2_resident = nB > 1 and (2 * N_pad * D * itemsize) <= h2_budget

    # ---- pass 1: row-tiled normalization, 1/tau folding, diagonal ------------
    h1n, h2n, diag = pl.pallas_call(
        _normalize_kernel,
        out_shape=(jax.ShapeDtypeStruct((N_pad, D), compute_dtype),
                   jax.ShapeDtypeStruct((N_pad, D), compute_dtype),
                   jax.ShapeDtypeStruct((N_pad, 1), jnp.float32)),
        grid=(nB,),
        in_specs=[pl.BlockSpec((T, D), lambda i: (i, 0)),
                  pl.BlockSpec((T, D), lambda i: (i, 0))],
        out_specs=(pl.BlockSpec((T, D), lambda i: (i, 0)),
                   pl.BlockSpec((T, D), lambda i: (i, 0)),
                   pl.BlockSpec((T, 1), lambda i: (i, 0))),
        compiler_params=pltpu.CompilerParams(
            dimension_semantics=("parallel",)),
    )(h1, h2)

    # ---- pass 2: tiled sum-exp in both directions -----------------------------
    if h2_resident:
        h2_spec = pl.BlockSpec((N_pad, D), lambda i, j: (0, 0))   # loaded once
    else:
        h2_spec = pl.BlockSpec((T, D), lambda i, j: (j, 0))

    kernel = functools.partial(_contrast_kernel, tile=T,
                               h2_resident=h2_resident, exp_dtype=exp_dtype)
    cost = pl.CostEstimate(
        flops=2 * N_pad * N_pad * D + 4 * N_pad * N_pad,
        transcendentals=N_pad * N_pad,
        bytes_accessed=N_pad * D * itemsize * (1 + (1 if h2_resident else nB))
                       + (N_pad + nB * N_pad) * 4)

    rowsum, colpart = pl.pallas_call(
        kernel,
        out_shape=(jax.ShapeDtypeStruct((N_pad, 1), jnp.float32),
                   jax.ShapeDtypeStruct((nB, 1, N_pad), jnp.float32)),
        grid=(nB, nB),
        in_specs=[pl.BlockSpec((T, D), lambda i, j: (i, 0)), h2_spec],
        out_specs=(pl.BlockSpec((T, 1), lambda i, j: (i, 0)),      # row sum-exp
                   pl.BlockSpec((1, 1, T), lambda i, j: (i, 0, j))),  # col partials
        compiler_params=pltpu.CompilerParams(
            # Row-block axis is independent across its outputs -> megacore can
            # shard it on v7x; the j axis accumulates rowsum so stays arbitrary.
            dimension_semantics=("parallel", "arbitrary"),
            vmem_limit_bytes=vmem_limit),
        cost_estimate=cost,
    )(h1n, h2n)

    # ---- tiny O(N) reduction in plain XLA -------------------------------------
    rs = rowsum[:N, 0]                          # sum_j exp(sim[i, j])
    cs = jnp.sum(colpart, axis=(0, 1))[:N]      # sum_i exp(sim[i, j])
    dg = diag[:N, 0]                            # sim[i, i]
    if pad:
        rs = rs - float(pad)                    # exact removal of padded exp(0)=1
        cs = cs - float(pad)
    total = 2.0 * jnp.sum(dg) - jnp.sum(jnp.log(rs)) - jnp.sum(jnp.log(cs))
    return -total / (2.0 * N)


# ---------------------------------- reference ---------------------------------
def _reference(h1, h2):
    def normalize(x):
        n = jnp.sqrt(jnp.sum(x * x, axis=-1, keepdims=True))
        return x / jnp.maximum(n, EPS)

    h1n, h2n = normalize(h1), normalize(h2)
    sim = (h1n @ h2n.T) / TAU

    def infonce(s):
        lse = jnp.log(jnp.sum(jnp.exp(s), axis=1))
        return -jnp.mean(jnp.diagonal(s) - lse)

    return 0.5 * (infonce(sim) + infonce(sim.T))


# TODO(synk): modes 'G2G'/'G2L', intraview_negs=True and extra_pos/neg_mask of the
# PyTorch module change the pos/neg masks at runtime and are not covered by this
# eye-mask L2L kernel.

if __name__ == "__main__":
    key = jax.random.PRNGKey(0)
    k1, k2, k3, k4, k5, k6 = jax.random.split(key, 6)

    # 1) Small single-block path (N pads to 128), default bf16 operands.
    N, D = 8, 32
    h1 = jax.random.normal(k1, (N, D), dtype=jnp.float32)
    h2 = jax.random.normal(k2, (N, D), dtype=jnp.float32)
    ref = _reference(h1, h2)
    out = dual_branch_contrast_l2l(h1, h2)
    jax.block_until_ready(out)
    assert jnp.allclose(out, ref, rtol=6e-2, atol=6e-2), (out, ref)

    # f32 operand path on the same inputs (tighter tolerance).
    out_f32 = dual_branch_contrast_l2l(h1, h2, compute_dtype=jnp.float32)
    jax.block_until_ready(out_f32)
    assert jnp.allclose(out_f32, ref, rtol=2e-2, atol=2e-2), (out_f32, ref)

    # 2) Multi-block grid (2x2), f32 operands, resident-h2 slicing path.
    N2, D2 = 256, 64
    g1 = jax.random.normal(k3, (N2, D2), dtype=jnp.float32)
    g2 = jax.random.normal(k4, (N2, D2), dtype=jnp.float32)
    ref2 = _reference(g1, g2)
    out2 = dual_branch_contrast_l2l(g1, g2, compute_dtype=jnp.float32, tile=128)
    jax.block_until_ready(out2)
    assert jnp.allclose(out2, ref2, rtol=2e-2, atol=2e-2), (out2, ref2)

    # Same grid, bf16 operands + forced bf16 exp + non-resident h2 blocks.
    out2b = dual_branch_contrast_l2l(g1, g2, tile=128, h2_resident=False,
                                     exp_dtype=jnp.bfloat16)
    jax.block_until_ready(out2b)
    assert jnp.allclose(out2b, ref2, rtol=6e-2, atol=6e-2), (out2b, ref2)

    # 3) Ragged N (pads 200 -> 256) with a 2x2 grid: exercises padding correction.
    N3, D3 = 200, 48
    r1 = jax.random.normal(k5, (N3, D3), dtype=jnp.float32)
    r2 = jax.random.normal(k6, (N3, D3), dtype=jnp.float32)
    ref3 = _reference(r1, r2)
    out3 = dual_branch_contrast_l2l(r1, r2, tile=128)
    jax.block_until_ready(out3)
    assert jnp.allclose(out3, ref3, rtol=6e-2, atol=6e-2), (out3, ref3)

    print("KERNEL_OK")
</pallas_src>

<mosaic_0001>
module attributes {stable_mosaic.version = 11 : i64} {
  func.func @_normalize_kernel(%arg0: i32, %arg1: memref<128x32xf32, #tpu.memory_space<vmem>>, %arg2: memref<128x32xf32, #tpu.memory_space<vmem>>, %arg3: memref<128x32xbf16, #tpu.memory_space<vmem>>, %arg4: memref<128x32xbf16, #tpu.memory_space<vmem>>, %arg5: memref<128x1xf32, #tpu.memory_space<vmem>>) attributes {dimension_semantics = [#tpu.dimension_semantics<parallel>], iteration_bounds = array<i64: 1>, scalar_prefetch = 0 : i64, scratch_operands = 0 : i64, tpu.core_type = #tpu.core_type<tc>, window_params = [{transform_indices = @transform_0, window_bounds = array<i64: 128, 32>}, {transform_indices = @transform_1, window_bounds = array<i64: 128, 32>}, {transform_indices = @transform_2, window_bounds = array<i64: 128, 32>}, {transform_indices = @transform_3, window_bounds = array<i64: 128, 32>}, {transform_indices = @transform_4, window_bounds = array<i64: 128, 1>}]} {
    %c0 = arith.constant 0 : index
    %c0_0 = arith.constant 0 : index
    %0 = vector.load %arg1[%c0, %c0_0] : memref<128x32xf32, #tpu.memory_space<vmem>>, vector<128x32xf32>
    %c0_1 = arith.constant 0 : index
    %c0_2 = arith.constant 0 : index
    %1 = vector.load %arg2[%c0_1, %c0_2] : memref<128x32xf32, #tpu.memory_space<vmem>>, vector<128x32xf32>
    %2 = arith.mulf %0, %0 : vector<128x32xf32>
    %cst = arith.constant dense<0.000000e+00> : vector<128xf32>
    %3 = vector.multi_reduction <add>, %2, %cst [1] : vector<128x32xf32> to vector<128xf32>
    %4 = vector.shape_cast %3 : vector<128xf32> to vector<128x1xf32>
    %5 = math.sqrt %4 : vector<128x1xf32>
    %6 = arith.mulf %1, %1 : vector<128x32xf32>
    %cst_3 = arith.constant dense<0.000000e+00> : vector<128xf32>
    %7 = vector.multi_reduction <add>, %6, %cst_3 [1] : vector<128x32xf32> to vector<128xf32>
    %8 = vector.shape_cast %7 : vector<128xf32> to vector<128x1xf32>
    %9 = math.sqrt %8 : vector<128x1xf32>
    %cst_4 = arith.constant 9.99999996E-13 : f32
    %10 = vector.broadcast %cst_4 : f32 to vector<128x1xf32>
    %11 = arith.maximumf %5, %10 : vector<128x1xf32>
    %cst_5 = arith.constant 5.000000e+00 : f32
    %12 = vector.broadcast %cst_5 : f32 to vector<128x1xf32>
    %13 = arith.divf %12, %11 : vector<128x1xf32>
    %cst_6 = arith.constant 9.99999996E-13 : f32
    %14 = vector.broadcast %cst_6 : f32 to vector<128x1xf32>
    %15 = arith.maximumf %9, %14 : vector<128x1xf32>
    %cst_7 = arith.constant 1.000000e+00 : f32
    %16 = vector.broadcast %cst_7 : f32 to vector<128x1xf32>
    %17 = arith.divf %16, %15 : vector<128x1xf32>
    %18 = vector.broadcast %13 : vector<128x1xf32> to vector<128x32xf32>
    %19 = arith.mulf %0, %18 : vector<128x32xf32>
    %20 = vector.broadcast %17 : vector<128x1xf32> to vector<128x32xf32>
    %21 = arith.mulf %1, %20 : vector<128x32xf32>
    %22 = arith.truncf %19 : vector<128x32xf32> to vector<128x32xbf16>
    %c0_8 = arith.constant 0 : index
    %c0_9 = arith.constant 0 : index
    %23 = vector.load %arg3[%c0_8, %c0_9] : memref<128x32xbf16, #tpu.memory_space<vmem>>, vector<128x32xbf16>
    tpu.vector_store %arg3[%c0_8, %c0_9], %22 {strides = array<i32>} : memref<128x32xbf16, #tpu.memory_space<vmem>>, vector<128x32xbf16>,
    %24 = arith.truncf %21 : vector<128x32xf32> to vector<128x32xbf16>
    %c0_10 = arith.constant 0 : index
    %c0_11 = arith.constant 0 : index
    %25 = vector.load %arg4[%c0_10, %c0_11] : memref<128x32xbf16, #tpu.memory_space<vmem>>, vector<128x32xbf16>
    tpu.vector_store %arg4[%c0_10, %c0_11], %24 {strides = array<i32>} : memref<128x32xbf16, #tpu.memory_space<vmem>>, vector<128x32xbf16>,
    %26 = arith.mulf %19, %21 : vector<128x32xf32>
    %cst_12 = arith.constant dense<0.000000e+00> : vector<128xf32>
    %27 = vector.multi_reduction <add>, %26, %cst_12 [1] : vector<128x32xf32> to vector<128xf32>
    %28 = vector.shape_cast %27 : vector<128xf32> to vector<128x1xf32>
    %c0_13 = arith.constant 0 : index
    %c0_14 = arith.constant 0 : index
    %29 = vector.load %arg5[%c0_13, %c0_14] : memref<128x1xf32, #tpu.memory_space<vmem>>, vector<128x1xf32>
    tpu.vector_store %arg5[%c0_13, %c0_14], %28 {strides = array<i32>} : memref<128x1xf32, #tpu.memory_space<vmem>>, vector<128x1xf32>,
    return
  }
  func.func @transform_0(%arg0: i32) -> (i32, i32) {
    %c0_i32 = arith.constant 0 : i32
    %c0_i32_0 = arith.constant 0 : i32
    return %arg0, %c0_i32 : i32, i32
  }
  func.func @transform_1(%arg0: i32) -> (i32, i32) {
    %c0_i32 = arith.constant 0 : i32
    %c0_i32_0 = arith.constant 0 : i32
    return %arg0, %c0_i32 : i32, i32
  }
  func.func @transform_2(%arg0: i32) -> (i32, i32) {
    %c0_i32 = arith.constant 0 : i32
    %c0_i32_0 = arith.constant 0 : i32
    return %arg0, %c0_i32 : i32, i32
  }
  func.func @transform_3(%arg0: i32) -> (i32, i32) {
    %c0_i32 = arith.constant 0 : i32
    %c0_i32_0 = arith.constant 0 : i32
    return %arg0, %c0_i32 : i32, i32
  }
  func.func @transform_4(%arg0: i32) -> (i32, i32) {
    %c0_i32 = arith.constant 0 : i32
    %c0_i32_0 = arith.constant 0 : i32
    return %arg0, %c0_i32 : i32, i32
  }
}

</mosaic_0001>

<llo_original>
// kernel: tpu_custom_call.1
$region0: #{tpu_custom_call.1}
  #allocation0 [shape = 'u32[]', space=smem, size = 0x4, offset = 0x4, fixed_abs, tag = 'smem constant byte address 0x4 - core index']
  #allocation1 [shape = 'u32[72,128]{1,0:T(1,128)}', space=vmem, size = 0x9000, scoped, tag = 'internal scratch']
  %s0 = inlined_call_operand.vmem [shape: f32[128,32], index: 0, kind: input, shape index: {}]
  %s1 = inlined_call_operand.vmem [shape: f32[128,32], index: 1, kind: input, shape index: {}]
  %s2 = inlined_call_operand.vmem [shape: bf16[128,32], index: 2, kind: output, shape index: {0}]
  %s3 = inlined_call_operand.vmem [shape: bf16[128,32], index: 3, kind: output, shape index: {1}]
  %s4 = inlined_call_operand.vmem [shape: f32[128,1], index: 4, kind: output, shape index: {2}]
  %5 = xla_tuple %s2, %s3, %s4
  %s6 = sld [smem:[#allocation0]]
  $region34: #{tpu_custom_call.1} parent=0
    _
  %s8 = ssub.s32 1, %s6
  %s9 = scalar_select 0, %s8, %s6
  // Predicated region
  $region2: #{tpu_custom_call.1} parent=0 // pred_check
    _
  $region3: #{tpu_custom_call.1} parent=0 // pred_check_branch
    %11 = sbr.rel (0) target = $region5
  $region4: #{tpu_custom_call.1} parent=0 // pred_region
    _
  $region5: #{tpu_custom_call.1} parent=0 // pred_fallthru
    _
  // Predicated region
  $region6: #{tpu_custom_call.1} parent=0 // pred_check
    _
  $region7: #{tpu_custom_call.1} parent=0 // pred_check_branch
    %13 = sbr.rel (0) target = $region9
  $region8: #{tpu_custom_call.1} parent=0 // pred_region
    _
  $region9: #{tpu_custom_call.1} parent=0 // pred_fallthru
    _
  %v14 = vld [vmem:[%s0] sm:$0xff]
  %v15 = vld [vmem:[%s0 + $0x8] sm:$0xff]
  %v16 = vld [vmem:[%s0 + $0x10] sm:$0xff]
  %v17 = vld [vmem:[%s0 + $0x18] sm:$0xff]
  %v18 = vld [vmem:[%s0 + $0x20] sm:$0xff]
  %v19 = vld [vmem:[%s0 + $0x28] sm:$0xff]
  %v20 = vld [vmem:[%s0 + $0x30] sm:$0xff]
  %v21 = vld [vmem:[%s0 + $0x38] sm:$0xff]
  %v22 = vld [vmem:[%s0 + $0x40] sm:$0xff]
  %v23 = vld [vmem:[%s0 + $0x48] sm:$0xff]
  %v24 = vld [vmem:[%s0 + $0x50] sm:$0xff]
  %v25 = vld [vmem:[%s0 + $0x58] sm:$0xff]
  %v26 = vld [vmem:[%s0 + $0x60] sm:$0xff]
  %v27 = vld [vmem:[%s0 + $0x68] sm:$0xff]
  %v28 = vld [vmem:[%s0 + $0x70] sm:$0xff]
  %v29 = vld [vmem:[%s0 + $0x78] sm:$0xff]
  %v30 = vld [vmem:[%s1] sm:$0xff]
  %v31 = vld [vmem:[%s1 + $0x8] sm:$0xff]
  %v32 = vld [vmem:[%s1 + $0x10] sm:$0xff]
  %v33 = vld [vmem:[%s1 + $0x18] sm:$0xff]
  %v34 = vld [vmem:[%s1 + $0x20] sm:$0xff]
  %v35 = vld [vmem:[%s1 + $0x28] sm:$0xff]
  %v36 = vld [vmem:[%s1 + $0x30] sm:$0xff]
  %v37 = vld [vmem:[%s1 + $0x38] sm:$0xff]
  %v38 = vld [vmem:[%s1 + $0x40] sm:$0xff]
  %v39 = vld [vmem:[%s1 + $0x48] sm:$0xff]
  %v40 = vld [vmem:[%s1 + $0x50] sm:$0xff]
  %v41 = vld [vmem:[%s1 + $0x58] sm:$0xff]
  %v42 = vld [vmem:[%s1 + $0x60] sm:$0xff]
  %v43 = vld [vmem:[%s1 + $0x68] sm:$0xff]
  %v44 = vld [vmem:[%s1 + $0x70] sm:$0xff]
  %v45 = vld [vmem:[%s1 + $0x78] sm:$0xff]
  %v46 = vmul.f32 %v14, %v14
  %v47 = vmul.f32 %v15, %v15
  %v48 = vmul.f32 %v16, %v16
  %v49 = vmul.f32 %v17, %v17
  %v50 = vmul.f32 %v18, %v18
  %v51 = vmul.f32 %v19, %v19
  %v52 = vmul.f32 %v20, %v20
  %v53 = vmul.f32 %v21, %v21
  %v54 = vmul.f32 %v22, %v22
  %v55 = vmul.f32 %v23, %v23
  %v56 = vmul.f32 %v24, %v24
  %v57 = vmul.f32 %v25, %v25
  %v58 = vmul.f32 %v26, %v26
  %v59 = vmul.f32 %v27, %v27
  %v60 = vmul.f32 %v28, %v28
  %v61 = vmul.f32 %v29, %v29
  %vm62 = vcmask 261120
  %v63 = vsel %vm62, %v46, 0.0
  %64 = vadd.xlane.f32.xlu0 %v63
  %v65 = vpop.xlane.xlu0 %64
  %v66 = vsel %vm62, %v47, 0.0
  %67 = vadd.xlane.f32.xlu0 %v66
  %v68 = vpop.xlane.xlu0 %67
  %v69 = vsel %vm62, %v48, 0.0
  %70 = vadd.xlane.f32.xlu0 %v69
  %v71 = vpop.xlane.xlu0 %70
  %v72 = vsel %vm62, %v49, 0.0
  %73 = vadd.xlane.f32.xlu0 %v72
  %v74 = vpop.xlane.xlu0 %73
  %v75 = vsel %vm62, %v50, 0.0
  %76 = vadd.xlane.f32.xlu0 %v75
  %v77 = vpop.xlane.xlu0 %76
  %v78 = vsel %vm62, %v51, 0.0
  %79 = vadd.xlane.f32.xlu0 %v78
  %v80 = vpop.xlane.xlu0 %79
  %v81 = vsel %vm62, %v52, 0.0
  %82 = vadd.xlane.f32.xlu0 %v81
  %v83 = vpop.xlane.xlu0 %82
  %v84 = vsel %vm62, %v53, 0.0
  %85 = vadd.xlane.f32.xlu0 %v84
  %v86 = vpop.xlane.xlu0 %85
  %v87 = vsel %vm62, %v54, 0.0
  %88 = vadd.xlane.f32.xlu0 %v87
  %v89 = vpop.xlane.xlu0 %88
  %v90 = vsel %vm62, %v55, 0.0
  %91 = vadd.xlane.f32.xlu0 %v90
  %v92 = vpop.xlane.xlu0 %91
  %v93 = vsel %vm62, %v56, 0.0
  %94 = vadd.xlane.f32.xlu0 %v93
  %v95 = vpop.xlane.xlu0 %94
  %v96 = vsel %vm62, %v57, 0.0
  %97 = vadd.xlane.f32.xlu0 %v96
  %v98 = vpop.xlane.xlu0 %97
  %v99 = vsel %vm62, %v58, 0.0
  %100 = vadd.xlane.f32.xlu0 %v99
  %v101 = vpop.xlane.xlu0 %100
  %v102 = vsel %vm62, %v59, 0.0
  %103 = vadd.xlane.f32.xlu0 %v102
  %v104 = vpop.xlane.xlu0 %103
  %v105 = vsel %vm62, %v60, 0.0
  %106 = vadd.xlane.f32.xlu0 %v105
  %v107 = vpop.xlane.xlu0 %106
  %v108 = vsel %vm62, %v61, 0.0
  %109 = vadd.xlane.f32.xlu0 %v108
  %v110 = vpop.xlane.xlu0 %109
  %v111 = vrsqrt.pop %v65
  %v112 = vmul.f32 %v111, %v65
  %v113 = vmul.f32 %v112, %v111
  %v114 = vmul.f32 0.5, %v113
  %v115 = vsub.f32 1.5, %v114
  %v116 = vmul.f32 %v111, %v115
  %v117 = vmul.f32 %v65, %v116
  %vm118 = vcmp.eq.f32.partialorder %v65, inf
  %v119 = vsel %vm118, %v65, %v117
  %vm120 = vcmp.eq.f32.partialorder %v65, 0.0
  %v121 = vand.u32 %v65, 2147483648
  %v122 = vsel %vm120, %v121, %v119
  %v123 = vrsqrt.pop %v68
  %v124 = vmul.f32 %v123, %v68
  %v125 = vmul.f32 %v124, %v123
  %v126 = vmul.f32 0.5, %v125
  %v127 = vsub.f32 1.5, %v126
  %v128 = vmul.f32 %v123, %v127
  %v129 = vmul.f32 %v68, %v128
  %vm130 = vcmp.eq.f32.partialorder %v68, inf
  %v131 = vsel %vm130, %v68, %v129
  %vm132 = vcmp.eq.f32.partialorder %v68, 0.0
  %v133 = vand.u32 %v68, 2147483648
  %v134 = vsel %vm132, %v133, %v131
  %v135 = vrsqrt.pop %v71
  %v136 = vmul.f32 %v135, %v71
  %v137 = vmul.f32 %v136, %v135
  %v138 = vmul.f32 0.5, %v137
  %v139 = vsub.f32 1.5, %v138
  %v140 = vmul.f32 %v135, %v139
  %v141 = vmul.f32 %v71, %v140
  %vm142 = vcmp.eq.f32.partialorder %v71, inf
  %v143 = vsel %vm142, %v71, %v141
  %vm144 = vcmp.eq.f32.partialorder %v71, 0.0
  %v145 = vand.u32 %v71, 2147483648
  %v146 = vsel %vm144, %v145, %v143
  %v147 = vrsqrt.pop %v74
  %v148 = vmul.f32 %v147, %v74
  %v149 = vmul.f32 %v148, %v147
  %v150 = vmul.f32 0.5, %v149
  %v151 = vsub.f32 1.5, %v150
  %v152 = vmul.f32 %v147, %v151
  %v153 = vmul.f32 %v74, %v152
  %vm154 = vcmp.eq.f32.partialorder %v74, inf
  %v155 = vsel %vm154, %v74, %v153
  %vm156 = vcmp.eq.f32.partialorder %v74, 0.0
  %v157 = vand.u32 %v74, 2147483648
  %v158 = vsel %vm156, %v157, %v155
  %v159 = vrsqrt.pop %v77
  %v160 = vmul.f32 %v159, %v77
  %v161 = vmul.f32 %v160, %v159
  %v162 = vmul.f32 0.5, %v161
  %v163 = vsub.f32 1.5, %v162
  %v164 = vmul.f32 %v159, %v163
  %v165 = vmul.f32 %v77, %v164
  %vm166 = vcmp.eq.f32.partialorder %v77, inf
  %v167 = vsel %vm166, %v77, %v165
  %vm168 = vcmp.eq.f32.partialorder %v77, 0.0
  %v169 = vand.u32 %v77, 2147483648
  %v170 = vsel %vm168, %v169, %v167
  %v171 = vrsqrt.pop %v80
  %v172 = vmul.f32 %v171, %v80
  %v173 = vmul.f32 %v172, %v171
  %v174 = vmul.f32 0.5, %v173
  %v175 = vsub.f32 1.5, %v174
  %v176 = vmul.f32 %v171, %v175
  %v177 = vmul.f32 %v80, %v176
  %vm178 = vcmp.eq.f32.partialorder %v80, inf
  %v179 = vsel %vm178, %v80, %v177
  %vm180 = vcmp.eq.f32.partialorder %v80, 0.0
  %v181 = vand.u32 %v80, 2147483648
  %v182 = vsel %vm180, %v181, %v179
  %v183 = vrsqrt.pop %v83
  %v184 = vmul.f32 %v183, %v83
  %v185 = vmul.f32 %v184, %v183
  %v186 = vmul.f32 0.5, %v185
  %v187 = vsub.f32 1.5, %v186
  %v188 = vmul.f32 %v183, %v187
  %v189 = vmul.f32 %v83, %v188
  %vm190 = vcmp.eq.f32.partialorder %v83, inf
  %v191 = vsel %vm190, %v83, %v189
  %vm192 = vcmp.eq.f32.partialorder %v83, 0.0
  %v193 = vand.u32 %v83, 2147483648
  %v194 = vsel %vm192, %v193, %v191
  %v195 = vrsqrt.pop %v86
  %v196 = vmul.f32 %v195, %v86
  %v197 = vmul.f32 %v196, %v195
  %v198 = vmul.f32 0.5, %v197
  %v199 = vsub.f32 1.5, %v198
  %v200 = vmul.f32 %v195, %v199
  %v201 = vmul.f32 %v86, %v200
  %vm202 = vcmp.eq.f32.partialorder %v86, inf
  %v203 = vsel %vm202, %v86, %v201
  %vm204 = vcmp.eq.f32.partialorder %v86, 0.0
  %v205 = vand.u32 %v86, 2147483648
  %v206 = vsel %vm204, %v205, %v203
  %v207 = vrsqrt.pop %v89
  %v208 = vmul.f32 %v207, %v89
  %v209 = vmul.f32 %v208, %v207
  %v210 = vmul.f32 0.5, %v209
  %v211 = vsub.f32 1.5, %v210
  %v212 = vmul.f32 %v207, %v211
  %v213 = vmul.f32 %v89, %v212
  %vm214 = vcmp.eq.f32.partialorder %v89, inf
  %v215 = vsel %vm214, %v89, %v213
  %vm216 = vcmp.eq.f32.partialorder %v89, 0.0
  %v217 = vand.u32 %v89, 2147483648
  %v218 = vsel %vm216, %v217, %v215
  %v219 = vrsqrt.pop %v92
  %v220 = vmul.f32 %v219, %v92
  %v221 = vmul.f32 %v220, %v219
  %v222 = vmul.f32 0.5, %v221
  %v223 = vsub.f32 1.5, %v222
  %v224 = vmul.f32 %v219, %v223
  %v225 = vmul.f32 %v92, %v224
  %vm226 = vcmp.eq.f32.partialorder %v92, inf
  %v227 = vsel %vm226, %v92, %v225
  %vm228 = vcmp.eq.f32.partialorder %v92, 0.0
  %v229 = vand.u32 %v92, 2147483648
  %v230 = vsel %vm228, %v229, %v227
  %v231 = vrsqrt.pop %v95
  %v232 = vmul.f32 %v231, %v95
  %v233 = vmul.f32 %v232, %v231
  %v234 = vmul.f32 0.5, %v233
  %v235 = vsub.f32 1.5, %v234
  %v236 = vmul.f32 %v231, %v235
  %v237 = vmul.f32 %v95, %v236
  %vm238 = vcmp.eq.f32.partialorder %v95, inf
  %v239 = vsel %vm238, %v95, %v237
  %vm240 = vcmp.eq.f32.partialorder %v95, 0.0
  %v241 = vand.u32 %v95, 2147483648
  %v242 = vsel %vm240, %v241, %v239
  %v243 = vrsqrt.pop %v98
  %v244 = vmul.f32 %v243, %v98
  %v245 = vmul.f32 %v244, %v243
  %v246 = vmul.f32 0.5, %v245
  %v247 = vsub.f32 1.5, %v246
  %v248 = vmul.f32 %v243, %v247
  %v249 = vmul.f32 %v98, %v248
  %vm250 = vcmp.eq.f32.partialorder %v98, inf
  %v251 = vsel %vm250, %v98, %v249
  %vm252 = vcmp.eq.f32.partialorder %v98, 0.0
  %v253 = vand.u32 %v98, 2147483648
  %v254 = vsel %vm252, %v253, %v251
  %v255 = vrsqrt.pop %v101
  %v256 = vmul.f32 %v255, %v101
  %v257 = vmul.f32 %v256, %v255
  %v258 = vmul.f32 0.5, %v257
  %v259 = vsub.f32 1.5, %v258
  %v260 = vmul.f32 %v255, %v259
  %v261 = vmul.f32 %v101, %v260
  %vm262 = vcmp.eq.f32.partialorder %v101, inf
  %v263 = vsel %vm262, %v101, %v261
  %vm264 = vcmp.eq.f32.partialorder %v101, 0.0
  %v265 = vand.u32 %v101, 2147483648
  %v266 = vsel %vm264, %v265, %v263
  %v267 = vrsqrt.pop %v104
  %v268 = vmul.f32 %v267, %v104
  %v269 = vmul.f32 %v268, %v267
  %v270 = vmul.f32 0.5, %v269
  %v271 = vsub.f32 1.5, %v270
  %v272 = vmul.f32 %v267, %v271
  %v273 = vmul.f32 %v104, %v272
  %vm274 = vcmp.eq.f32.partialorder %v104, inf
  %v275 = vsel %vm274, %v104, %v273
  %vm276 = vcmp.eq.f32.partialorder %v104, 0.0
  %v277 = vand.u32 %v104, 2147483648
  %v278 = vsel %vm276, %v277, %v275
  %v279 = vrsqrt.pop %v107
  %v280 = vmul.f32 %v279, %v107
  %v281 = vmul.f32 %v280, %v279
  %v282 = vmul.f32 0.5, %v281
  %v283 = vsub.f32 1.5, %v282
  %v284 = vmul.f32 %v279, %v283
  %v285 = vmul.f32 %v107, %v284
  %vm286 = vcmp.eq.f32.partialorder %v107, inf
  %v287 = vsel %vm286, %v107, %v285
  %vm288 = vcmp.eq.f32.partialorder %v107, 0.0
  %v289 = vand.u32 %v107, 2147483648
  %v290 = vsel %vm288, %v289, %v287
  %v291 = vrsqrt.pop %v110
  %v292 = vmul.f32 %v291, %v110
  %v293 = vmul.f32 %v292, %v291
  %v294 = vmul.f32 0.5, %v293
  %v295 = vsub.f32 1.5, %v294
  %v296 = vmul.f32 %v291, %v295
  %v297 = vmul.f32 %v110, %v296
  %vm298 = vcmp.eq.f32.partialorder %v110, inf
  %v299 = vsel %vm298, %v110, %v297
  %vm300 = vcmp.eq.f32.partialorder %v110, 0.0
  %v301 = vand.u32 %v110, 2147483648
  %v302 = vsel %vm300, %v301, %v299
  %v303 = vmul.f32 %v30, %v30
  %v304 = vmul.f32 %v31, %v31
  %v305 = vmul.f32 %v32, %v32
  %v306 = vmul.f32 %v33, %v33
  %v307 = vmul.f32 %v34, %v34
  %v308 = vmul.f32 %v35, %v35
  %v309 = vmul.f32 %v36, %v36
  %v310 = vmul.f32 %v37, %v37
  %v311 = vmul.f32 %v38, %v38
  %v312 = vmul.f32 %v39, %v39
  %v313 = vmul.f32 %v40, %v40
  %v314 = vmul.f32 %v41, %v41
  %v315 = vmul.f32 %v42, %v42
  %v316 = vmul.f32 %v43, %v43
  %v317 = vmul.f32 %v44, %v44
  %v318 = vmul.f32 %v45, %v45
  %v319 = vsel %vm62, %v303, 0.0
  %320 = vadd.xlane.f32.xlu0 %v319
  %v321 = vpop.xlane.xlu0 %320
  %v322 = vsel %vm62, %v304, 0.0
  %323 = vadd.xlane.f32.xlu0 %v322
  %v324 = vpop.xlane.xlu0 %323
  %v325 = vsel %vm62, %v305, 0.0
  %326 = vadd.xlane.f32.xlu0 %v325
  %v327 = vpop.xlane.xlu0 %326
  %v328 = vsel %vm62, %v306, 0.0
  %329 = vadd.xlane.f32.xlu0 %v328
  %v330 = vpop.xlane.xlu0 %329
  %v331 = vsel %vm62, %v307, 0.0
  %332 = vadd.xlane.f32.xlu0 %v331
  %v333 = vpop.xlane.xlu0 %332
  %v334 = vsel %vm62, %v308, 0.0
  %335 = vadd.xlane.f32.xlu0 %v334
  %v336 = vpop.xlane.xlu0 %335
  %v337 = vsel %vm62, %v309, 0.0
  %338 = vadd.xlane.f32.xlu0 %v337
  %v339 = vpop.xlane.xlu0 %338
  %v340 = vsel %vm62, %v310, 0.0
  %341 = vadd.xlane.f32.xlu0 %v340
  %v342 = vpop.xlane.xlu0 %341
  %v343 = vsel %vm62, %v311, 0.0
  %344 = vadd.xlane.f32.xlu0 %v343
  %v345 = vpop.xlane.xlu0 %344
  %v346 = vsel %vm62, %v312, 0.0
  %347 = vadd.xlane.f32.xlu0 %v346
  %v348 = vpop.xlane.xlu0 %347
  %v349 = vsel %vm62, %v313, 0.0
  %350 = vadd.xlane.f32.xlu0 %v349
  %v351 = vpop.xlane.xlu0 %350
  %v352 = vsel %vm62, %v314, 0.0
  %353 = vadd.xlane.f32.xlu0 %v352
  %v354 = vpop.xlane.xlu0 %353
  %v355 = vsel %vm62, %v315, 0.0
  %356 = vadd.xlane.f32.xlu0 %v355
  %v357 = vpop.xlane.xlu0 %356
  %v358 = vsel %vm62, %v316, 0.0
  %359 = vadd.xlane.f32.xlu0 %v358
  %v360 = vpop.xlane.xlu0 %359
  %v361 = vsel %vm62, %v317, 0.0
  %362 = vadd.xlane.f32.xlu0 %v361
  %v363 = vpop.xlane.xlu0 %362
  %v364 = vsel %vm62, %v318, 0.0
  %365 = vadd.xlane.f32.xlu0 %v364
  %v366 = vpop.xlane.xlu0 %365
  %v367 = vrsqrt.pop %v321
  %v368 = vmul.f32 %v367, %v321
  %v369 = vmul.f32 %v368, %v367
  %v370 = vmul.f32 0.5, %v369
  %v371 = vsub.f32 1.5, %v370
  %v372 = vmul.f32 %v367, %v371
  %v373 = vmul.f32 %v321, %v372
  %vm374 = vcmp.eq.f32.partialorder %v321, inf
  %v375 = vsel %vm374, %v321, %v373
  %vm376 = vcmp.eq.f32.partialorder %v321, 0.0
  %v377 = vand.u32 %v321, 2147483648
  %v378 = vsel %vm376, %v377, %v375
  %v379 = vrsqrt.pop %v324
  %v380 = vmul.f32 %v379, %v324
  %v381 = vmul.f32 %v380, %v379
  %v382 = vmul.f32 0.5, %v381
  %v383 = vsub.f32 1.5, %v382
  %v384 = vmul.f32 %v379, %v383
  %v385 = vmul.f32 %v324, %v384
  %vm386 = vcmp.eq.f32.partialorder %v324, inf
  %v387 = vsel %vm386, %v324, %v385
  %vm388 = vcmp.eq.f32.partialorder %v324, 0.0
  %v389 = vand.u32 %v324, 2147483648
  %v390 = vsel %vm388, %v389, %v387
  %v391 = vrsqrt.pop %v327
  %v392 = vmul.f32 %v391, %v327
  %v393 = vmul.f32 %v392, %v391
  %v394 = vmul.f32 0.5, %v393
  %v395 = vsub.f32 1.5, %v394
  %v396 = vmul.f32 %v391, %v395
  %v397 = vmul.f32 %v327, %v396
  %vm398 = vcmp.eq.f32.partialorder %v327, inf
  %v399 = vsel %vm398, %v327, %v397
  %vm400 = vcmp.eq.f32.partialorder %v327, 0.0
  %v401 = vand.u32 %v327, 2147483648
  %v402 = vsel %vm400, %v401, %v399
  %v403 = vrsqrt.pop %v330
  %v404 = vmul.f32 %v403, %v330
  %v405 = vmul.f32 %v404, %v403
  %v406 = vmul.f32 0.5, %v405
  %v407 = vsub.f32 1.5, %v406
  %v408 = vmul.f32 %v403, %v407
  %v409 = vmul.f32 %v330, %v408
  %vm410 = vcmp.eq.f32.partialorder %v330, inf
  %v411 = vsel %vm410, %v330, %v409
  %vm412 = vcmp.eq.f32.partialorder %v330, 0.0
  %v413 = vand.u32 %v330, 2147483648
  %v414 = vsel %vm412, %v413, %v411
  %v415 = vrsqrt.pop %v333
  %v416 = vmul.f32 %v415, %v333
  %v417 = vmul.f32 %v416, %v415
  %v418 = vmul.f32 0.5, %v417
  %v419 = vsub.f32 1.5, %v418
  %v420 = vmul.f32 %v415, %v419
  %v421 = vmul.f32 %v333, %v420
  %vm422 = vcmp.eq.f32.partialorder %v333, inf
  %v423 = vsel %vm422, %v333, %v421
  %vm424 = vcmp.eq.f32.partialorder %v333, 0.0
  %v425 = vand.u32 %v333, 2147483648
  %v426 = vsel %vm424, %v425, %v423
  %v427 = vrsqrt.pop %v336
  %v428 = vmul.f32 %v427, %v336
  %v429 = vmul.f32 %v428, %v427
  %v430 = vmul.f32 0.5, %v429
  %v431 = vsub.f32 1.5, %v430
  %v432 = vmul.f32 %v427, %v431
  %v433 = vmul.f32 %v336, %v432
  %vm434 = vcmp.eq.f32.partialorder %v336, inf
  %v435 = vsel %vm434, %v336, %v433
  %vm436 = vcmp.eq.f32.partialorder %v336, 0.0
  %v437 = vand.u32 %v336, 2147483648
  %v438 = vsel %vm436, %v437, %v435
  %v439 = vrsqrt.pop %v339
  %v440 = vmul.f32 %v439, %v339
  %v441 = vmul.f32 %v440, %v439
  %v442 = vmul.f32 0.5, %v441
  %v443 = vsub.f32 1.5, %v442
  %v444 = vmul.f32 %v439, %v443
  %v445 = vmul.f32 %v339, %v444
  %vm446 = vcmp.eq.f32.partialorder %v339, inf
  %v447 = vsel %vm446, %v339, %v445
  %vm448 = vcmp.eq.f32.partialorder %v339, 0.0
  %v449 = vand.u32 %v339, 2147483648
  %v450 = vsel %vm448, %v449, %v447
  %v451 = vrsqrt.pop %v342
  %v452 = vmul.f32 %v451, %v342
  %v453 = vmul.f32 %v452, %v451
  %v454 = vmul.f32 0.5, %v453
  %v455 = vsub.f32 1.5, %v454
  %v456 = vmul.f32 %v451, %v455
  %v457 = vmul.f32 %v342, %v456
  %vm458 = vcmp.eq.f32.partialorder %v342, inf
  %v459 = vsel %vm458, %v342, %v457
  %vm460 = vcmp.eq.f32.partialorder %v342, 0.0
  %v461 = vand.u32 %v342, 2147483648
  %v462 = vsel %vm460, %v461, %v459
  %v463 = vrsqrt.pop %v345
  %v464 = vmul.f32 %v463, %v345
  %v465 = vmul.f32 %v464, %v463
  %v466 = vmul.f32 0.5, %v465
  %v467 = vsub.f32 1.5, %v466
  %v468 = vmul.f32 %v463, %v467
  %v469 = vmul.f32 %v345, %v468
  %vm470 = vcmp.eq.f32.partialorder %v345, inf
  %v471 = vsel %vm470, %v345, %v469
  %vm472 = vcmp.eq.f32.partialorder %v345, 0.0
  %v473 = vand.u32 %v345, 2147483648
  %v474 = vsel %vm472, %v473, %v471
  %v475 = vrsqrt.pop %v348
  %v476 = vmul.f32 %v475, %v348
  %v477 = vmul.f32 %v476, %v475
  %v478 = vmul.f32 0.5, %v477
  %v479 = vsub.f32 1.5, %v478
  %v480 = vmul.f32 %v475, %v479
  %v481 = vmul.f32 %v348, %v480
  %vm482 = vcmp.eq.f32.partialorder %v348, inf
  %v483 = vsel %vm482, %v348, %v481
  %vm484 = vcmp.eq.f32.partialorder %v348, 0.0
  %v485 = vand.u32 %v348, 2147483648
  %v486 = vsel %vm484, %v485, %v483
  %v487 = vrsqrt.pop %v351
  %v488 = vmul.f32 %v487, %v351
  %v489 = vmul.f32 %v488, %v487
  %v490 = vmul.f32 0.5, %v489
  %v491 = vsub.f32 1.5, %v490
  %v492 = vmul.f32 %v487, %v491
  %v493 = vmul.f32 %v351, %v492
  %vm494 = vcmp.eq.f32.partialorder %v351, inf
  %v495 = vsel %vm494, %v351, %v493
  %vm496 = vcmp.eq.f32.partialorder %v351, 0.0
  %v497 = vand.u32 %v351, 2147483648
  %v498 = vsel %vm496, %v497, %v495
  %v499 = vrsqrt.pop %v354
  %v500 = vmul.f32 %v499, %v354
  %v501 = vmul.f32 %v500, %v499
  %v502 = vmul.f32 0.5, %v501
  %v503 = vsub.f32 1.5, %v502
  %v504 = vmul.f32 %v499, %v503
  %v505 = vmul.f32 %v354, %v504
  %vm506 = vcmp.eq.f32.partialorder %v354, inf
  %v507 = vsel %vm506, %v354, %v505
  %vm508 = vcmp.eq.f32.partialorder %v354, 0.0
  %v509 = vand.u32 %v354, 2147483648
  %v510 = vsel %vm508, %v509, %v507
  %v511 = vrsqrt.pop %v357
  %v512 = vmul.f32 %v511, %v357
  %v513 = vmul.f32 %v512, %v511
  %v514 = vmul.f32 0.5, %v513
  %v515 = vsub.f32 1.5, %v514
  %v516 = vmul.f32 %v511, %v515
  %v517 = vmul.f32 %v357, %v516
  %vm518 = vcmp.eq.f32.partialorder %v357, inf
  %v519 = vsel %vm518, %v357, %v517
  %vm520 = vcmp.eq.f32.partialorder %v357, 0.0
  %v521 = vand.u32 %v357, 2147483648
  %v522 = vsel %vm520, %v521, %v519
  %v523 = vrsqrt.pop %v360
  %v524 = vmul.f32 %v523, %v360
  %v525 = vmul.f32 %v524, %v523
  %v526 = vmul.f32 0.5, %v525
  %v527 = vsub.f32 1.5, %v526
  %v528 = vmul.f32 %v523, %v527
  %v529 = vmul.f32 %v360, %v528
  %vm530 = vcmp.eq.f32.partialorder %v360, inf
  %v531 = vsel %vm530, %v360, %v529
  %vm532 = vcmp.eq.f32.partialorder %v360, 0.0
  %v533 = vand.u32 %v360, 2147483648
  %v534 = vsel %vm532, %v533, %v531
  %v535 = vrsqrt.pop %v363
  %v536 = vmul.f32 %v535, %v363
  %v537 = vmul.f32 %v536, %v535
  %v538 = vmul.f32 0.5, %v537
  %v539 = vsub.f32 1.5, %v538
  %v540 = vmul.f32 %v535, %v539
  %v541 = vmul.f32 %v363, %v540
  %vm542 = vcmp.eq.f32.partialorder %v363, inf
  %v543 = vsel %vm542, %v363, %v541
  %vm544 = vcmp.eq.f32.partialorder %v363, 0.0
  %v545 = vand.u32 %v363, 2147483648
  %v546 = vsel %vm544, %v545, %v543
  %v547 = vrsqrt.pop %v366
  %v548 = vmul.f32 %v547, %v366
  %v549 = vmul.f32 %v548, %v547
  %v550 = vmul.f32 0.5, %v549
  %v551 = vsub.f32 1.5, %v550
  %v552 = vmul.f32 %v547, %v551
  %v553 = vmul.f32 %v366, %v552
  %vm554 = vcmp.eq.f32.partialorder %v366, inf
  %v555 = vsel %vm554, %v366, %v553
  %vm556 = vcmp.eq.f32.partialorder %v366, 0.0
  %v557 = vand.u32 %v366, 2147483648
  %v558 = vsel %vm556, %v557, %v555
  %v559 = vmax.f32 %v122, 1e-12
  %v560 = vmax.f32 %v134, 1e-12
  %v561 = vmax.f32 %v146, 1e-12
  %v562 = vmax.f32 %v158, 1e-12
  %v563 = vmax.f32 %v170, 1e-12
  %v564 = vmax.f32 %v182, 1e-12
  %v565 = vmax.f32 %v194, 1e-12
  %v566 = vmax.f32 %v206, 1e-12
  %v567 = vmax.f32 %v218, 1e-12
  %v568 = vmax.f32 %v230, 1e-12
  %v569 = vmax.f32 %v242, 1e-12
  %v570 = vmax.f32 %v254, 1e-12
  %v571 = vmax.f32 %v266, 1e-12
  %v572 = vmax.f32 %v278, 1e-12
  %v573 = vmax.f32 %v290, 1e-12
  %v574 = vmax.f32 %v302, 1e-12
  %v575 = vrcp.pop %v559
  %v576 = vmul.f32 %v559, %v575
  %v577 = vsub.f32 1.0, %v576
  %v578 = vmul.f32 %v575, %v577
  %v579 = vadd.f32 %v575, %v578
  %vm580 = vweird.f32 %v559
  %vm581 = vweird.f32 %v575
  %vm582 = vmor %vm580, %vm581
  %v583 = vsel %vm582, %v575, %v579
  %v584 = vand.u32 2147483647, %v559
  %vm585 = vcmp.eq.f32.partialorder %v584, 8.507059e+37
  %v586 = vand.u32 %v559, 2147483648
  %v587 = vor.u32 1.1754944e-38, %v586
  %v588 = vsel %vm585, %v587, %v583
  %v589 = vmul.f32 5.0, %v588
  %v590 = vrcp.pop %v560
  %v591 = vmul.f32 %v560, %v590
  %v592 = vsub.f32 1.0, %v591
  %v593 = vmul.f32 %v590, %v592
  %v594 = vadd.f32 %v590, %v593
  %vm595 = vweird.f32 %v560
  %vm596 = vweird.f32 %v590
  %vm597 = vmor %vm595, %vm596
  %v598 = vsel %vm597, %v590, %v594
  %v599 = vand.u32 2147483647, %v560
  %vm600 = vcmp.eq.f32.partialorder %v599, 8.507059e+37
  %v601 = vand.u32 %v560, 2147483648
  %v602 = vor.u32 1.1754944e-38, %v601
  %v603 = vsel %vm600, %v602, %v598
  %v604 = vmul.f32 5.0, %v603
  %v605 = vrcp.pop %v561
  %v606 = vmul.f32 %v561, %v605
  %v607 = vsub.f32 1.0, %v606
  %v608 = vmul.f32 %v605, %v607
  %v609 = vadd.f32 %v605, %v608
  %vm610 = vweird.f32 %v561
  %vm611 = vweird.f32 %v605
  %vm612 = vmor %vm610, %vm611
  %v613 = vsel %vm612, %v605, %v609
  %v614 = vand.u32 2147483647, %v561
  %vm615 = vcmp.eq.f32.partialorder %v614, 8.507059e+37
  %v616 = vand.u32 %v561, 2147483648
  %v617 = vor.u32 1.1754944e-38, %v616
  %v618 = vsel %vm615, %v617, %v613
  %v619 = vmul.f32 5.0, %v618
  %v620 = vrcp.pop %v562
  %v621 = vmul.f32 %v562, %v620
  %v622 = vsub.f32 1.0, %v621
  %v623 = vmul.f32 %v620, %v622
  %v624 = vadd.f32 %v620, %v623
  %vm625 = vweird.f32 %v562
  %vm626 = vweird.f32 %v620
  %vm627 = vmor %vm625, %vm626
  %v628 = vsel %vm627, %v620, %v624
  %v629 = vand.u32 2147483647, %v562
  %vm630 = vcmp.eq.f32.partialorder %v629, 8.507059e+37
  %v631 = vand.u32 %v562, 2147483648
  %v632 = vor.u32 1.1754944e-38, %v631
  %v633 = vsel %vm630, %v632, %v628
  %v634 = vmul.f32 5.0, %v633
  %v635 = vrcp.pop %v563
  %v636 = vmul.f32 %v563, %v635
  %v637 = vsub.f32 1.0, %v636
  %v638 = vmul.f32 %v635, %v637
  %v639 = vadd.f32 %v635, %v638
  %vm640 = vweird.f32 %v563
  %vm641 = vweird.f32 %v635
  %vm642 = vmor %vm640, %vm641
  %v643 = vsel %vm642, %v635, %v639
  %v644 = vand.u32 2147483647, %v563
  %vm645 = vcmp.eq.f32.partialorder %v644, 8.507059e+37
  %v646 = vand.u32 %v563, 2147483648
  %v647 = vor.u32 1.1754944e-38, %v646
  %v648 = vsel %vm645, %v647, %v643
  %v649 = vmul.f32 5.0, %v648
  %v650 = vrcp.pop %v564
  %v651 = vmul.f32 %v564, %v650
  %v652 = vsub.f32 1.0, %v651
  %v653 = vmul.f32 %v650, %v652
  %v654 = vadd.f32 %v650, %v653
  %vm655 = vweird.f32 %v564
  %vm656 = vweird.f32 %v650
  %vm657 = vmor %vm655, %vm656
  %v658 = vsel %vm657, %v650, %v654
  %v659 = vand.u32 2147483647, %v564
  %vm660 = vcmp.eq.f32.partialorder %v659, 8.507059e+37
  %v661 = vand.u32 %v564, 2147483648
  %v662 = vor.u32 1.1754944e-38, %v661
  %v663 = vsel %vm660, %v662, %v658
  %v664 = vmul.f32 5.0, %v663
  %v665 = vrcp.pop %v565
  %v666 = vmul.f32 %v565, %v665
  %v667 = vsub.f32 1.0, %v666
  %v668 = vmul.f32 %v665, %v667
  %v669 = vadd.f32 %v665, %v668
  %vm670 = vweird.f32 %v565
  %vm671 = vweird.f32 %v665
  %vm672 = vmor %vm670, %vm671
  %v673 = vsel %vm672, %v665, %v669
  %v674 = vand.u32 2147483647, %v565
  %vm675 = vcmp.eq.f32.partialorder %v674, 8.507059e+37
  %v676 = vand.u32 %v565, 2147483648
  %v677 = vor.u32 1.1754944e-38, %v676
  %v678 = vsel %vm675, %v677, %v673
  %v679 = vmul.f32 5.0, %v678
  %v680 = vrcp.pop %v566
  %v681 = vmul.f32 %v566, %v680
  %v682 = vsub.f32 1.0, %v681
  %v683 = vmul.f32 %v680, %v682
  %v684 = vadd.f32 %v680, %v683
  %vm685 = vweird.f32 %v566
  %vm686 = vweird.f32 %v680
  %vm687 = vmor %vm685, %vm686
  %v688 = vsel %vm687, %v680, %v684
  %v689 = vand.u32 2147483647, %v566
  %vm690 = vcmp.eq.f32.partialorder %v689, 8.507059e+37
  %v691 = vand.u32 %v566, 2147483648
  %v692 = vor.u32 1.1754944e-38, %v691
  %v693 = vsel %vm690, %v692, %v688
  %v694 = vmul.f32 5.0, %v693
  %v695 = vrcp.pop %v567
  %v696 = vmul.f32 %v567, %v695
  %v697 = vsub.f32 1.0, %v696
  %v698 = vmul.f32 %v695, %v697
  %v699 = vadd.f32 %v695, %v698
  %vm700 = vweird.f32 %v567
  %vm701 = vweird.f32 %v695
  %vm702 = vmor %vm700, %vm701
  %v703 = vsel %vm702, %v695, %v699
  %v704 = vand.u32 2147483647, %v567
  %vm705 = vcmp.eq.f32.partialorder %v704, 8.507059e+37
  %v706 = vand.u32 %v567, 2147483648
  %v707 = vor.u32 1.1754944e-38, %v706
  %v708 = vsel %vm705, %v707, %v703
  %v709 = vmul.f32 5.0, %v708
  %v710 = vrcp.pop %v568
  %v711 = vmul.f32 %v568, %v710
  %v712 = vsub.f32 1.0, %v711
  %v713 = vmul.f32 %v710, %v712
  %v714 = vadd.f32 %v710, %v713
  %vm715 = vweird.f32 %v568
  %vm716 = vweird.f32 %v710
  %vm717 = vmor %vm715, %vm716
  %v718 = vsel %vm717, %v710, %v714
  %v719 = vand.u32 2147483647, %v568
  %vm720 = vcmp.eq.f32.partialorder %v719, 8.507059e+37
  %v721 = vand.u32 %v568, 2147483648
  %v722 = vor.u32 1.1754944e-38, %v721
  %v723 = vsel %vm720, %v722, %v718
  %v724 = vmul.f32 5.0, %v723
  %v725 = vrcp.pop %v569
  %v726 = vmul.f32 %v569, %v725
  %v727 = vsub.f32 1.0, %v726
  %v728 = vmul.f32 %v725, %v727
  %v729 = vadd.f32 %v725, %v728
  %vm730 = vweird.f32 %v569
  %vm731 = vweird.f32 %v725
  %vm732 = vmor %vm730, %vm731
  %v733 = vsel %vm732, %v725, %v729
  %v734 = vand.u32 2147483647, %v569
  %vm735 = vcmp.eq.f32.partialorder %v734, 8.507059e+37
  %v736 = vand.u32 %v569, 2147483648
  %v737 = vor.u32 1.1754944e-38, %v736
  %v738 = vsel %vm735, %v737, %v733
  %v739 = vmul.f32 5.0, %v738
  %v740 = vrcp.pop %v570
  %v741 = vmul.f32 %v570, %v740
  %v742 = vsub.f32 1.0, %v741
  %v743 = vmul.f32 %v740, %v742
  %v744 = vadd.f32 %v740, %v743
  %vm745 = vweird.f32 %v570
  %vm746 = vweird.f32 %v740
  %vm747 = vmor %vm745, %vm746
  %v748 = vsel %vm747, %v740, %v744
  %v749 = vand.u32 2147483647, %v570
  %vm750 = vcmp.eq.f32.partialorder %v749, 8.507059e+37
  %v751 = vand.u32 %v570, 2147483648
  %v752 = vor.u32 1.1754944e-38, %v751
  %v753 = vsel %vm750, %v752, %v748
  %v754 = vmul.f32 5.0, %v753
  %v755 = vrcp.pop %v571
  %v756 = vmul.f32 %v571, %v755
  %v757 = vsub.f32 1.0, %v756
  %v758 = vmul.f32 %v755, %v757
  %v759 = vadd.f32 %v755, %v758
  %vm760 = vweird.f32 %v571
  %vm761 = vweird.f32 %v755
  %vm762 = vmor %vm760, %vm761
  %v763 = vsel %vm762, %v755, %v759
  %v764 = vand.u32 2147483647, %v571
  %vm765 = vcmp.eq.f32.partialorder %v764, 8.507059e+37
  %v766 = vand.u32 %v571, 2147483648
  %v767 = vor.u32 1.1754944e-38, %v766
  %v768 = vsel %vm765, %v767, %v763
  %v769 = vmul.f32 5.0, %v768
  %v770 = vrcp.pop %v572
  %v771 = vmul.f32 %v572, %v770
  %v772 = vsub.f32 1.0, %v771
  %v773 = vmul.f32 %v770, %v772
  %v774 = vadd.f32 %v770, %v773
  %vm775 = vweird.f32 %v572
  %vm776 = vweird.f32 %v770
  %vm777 = vmor %vm775, %vm776
  %v778 = vsel %vm777, %v770, %v774
  %v779 = vand.u32 2147483647, %v572
  %vm780 = vcmp.eq.f32.partialorder %v779, 8.507059e+37
  %v781 = vand.u32 %v572, 2147483648
  %v782 = vor.u32 1.1754944e-38, %v781
  %v783 = vsel %vm780, %v782, %v778
  %v784 = vmul.f32 5.0, %v783
  %v785 = vrcp.pop %v573
  %v786 = vmul.f32 %v573, %v785
  %v787 = vsub.f32 1.0, %v786
  %v788 = vmul.f32 %v785, %v787
  %v789 = vadd.f32 %v785, %v788
  %vm790 = vweird.f32 %v573
  %vm791 = vweird.f32 %v785
  %vm792 = vmor %vm790, %vm791
  %v793 = vsel %vm792, %v785, %v789
  %v794 = vand.u32 2147483647, %v573
  %vm795 = vcmp.eq.f32.partialorder %v794, 8.507059e+37
  %v796 = vand.u32 %v573, 2147483648
  %v797 = vor.u32 1.1754944e-38, %v796
  %v798 = vsel %vm795, %v797, %v793
  %v799 = vmul.f32 5.0, %v798
  %v800 = vrcp.pop %v574
  %v801 = vmul.f32 %v574, %v800
  %v802 = vsub.f32 1.0, %v801
  %v803 = vmul.f32 %v800, %v802
  %v804 = vadd.f32 %v800, %v803
  %vm805 = vweird.f32 %v574
  %vm806 = vweird.f32 %v800
  %vm807 = vmor %vm805, %vm806
  %v808 = vsel %vm807, %v800, %v804
  %v809 = vand.u32 2147483647, %v574
  %vm810 = vcmp.eq.f32.partialorder %v809, 8.507059e+37
  %v811 = vand.u32 %v574, 2147483648
  %v812 = vor.u32 1.1754944e-38, %v811
  %v813 = vsel %vm810, %v812, %v808
  %v814 = vmul.f32 5.0, %v813
  %v815 = vmax.f32 %v378, 1e-12
  %v816 = vmax.f32 %v390, 1e-12
  %v817 = vmax.f32 %v402, 1e-12
  %v818 = vmax.f32 %v414, 1e-12
  %v819 = vmax.f32 %v426, 1e-12
  %v820 = vmax.f32 %v438, 1e-12
  %v821 = vmax.f32 %v450, 1e-12
  %v822 = vmax.f32 %v462, 1e-12
  %v823 = vmax.f32 %v474, 1e-12
  %v824 = vmax.f32 %v486, 1e-12
  %v825 = vmax.f32 %v498, 1e-12
  %v826 = vmax.f32 %v510, 1e-12
  %v827 = vmax.f32 %v522, 1e-12
  %v828 = vmax.f32 %v534, 1e-12
  %v829 = vmax.f32 %v546, 1e-12
  %v830 = vmax.f32 %v558, 1e-12
  %v831 = vrcp.pop %v815
  %v832 = vmul.f32 %v815, %v831
  %v833 = vsub.f32 1.0, %v832
  %v834 = vmul.f32 %v831, %v833
  %v835 = vadd.f32 %v831, %v834
  %vm836 = vweird.f32 %v815
  %vm837 = vweird.f32 %v831
  %vm838 = vmor %vm836, %vm837
  %v839 = vsel %vm838, %v831, %v835
  %v840 = vand.u32 2147483647, %v815
  %vm841 = vcmp.eq.f32.partialorder %v840, 8.507059e+37
  %v842 = vand.u32 %v815, 2147483648
  %v843 = vor.u32 1.1754944e-38, %v842
  %v844 = vsel %vm841, %v843, %v839
  %v845 = vmul.f32 1.0, %v844
  %v846 = vrcp.pop %v816
  %v847 = vmul.f32 %v816, %v846
  %v848 = vsub.f32 1.0, %v847
  %v849 = vmul.f32 %v846, %v848
  %v850 = vadd.f32 %v846, %v849
  %vm851 = vweird.f32 %v816
  %vm852 = vweird.f32 %v846
  %vm853 = vmor %vm851, %vm852
  %v854 = vsel %vm853, %v846, %v850
  %v855 = vand.u32 2147483647, %v816
  %vm856 = vcmp.eq.f32.partialorder %v855, 8.507059e+37
  %v857 = vand.u32 %v816, 2147483648
  %v858 = vor.u32 1.1754944e-38, %v857
  %v859 = vsel %vm856, %v858, %v854
  %v860 = vmul.f32 1.0, %v859
  %v861 = vrcp.pop %v817
  %v862 = vmul.f32 %v817, %v861
  %v863 = vsub.f32 1.0, %v862
  %v864 = vmul.f32 %v861, %v863
  %v865 = vadd.f32 %v861, %v864
  %vm866 = vweird.f32 %v817
  %vm867 = vweird.f32 %v861
  %vm868 = vmor %vm866, %vm867
  %v869 = vsel %vm868, %v861, %v865
  %v870 = vand.u32 2147483647, %v817
  %vm871 = vcmp.eq.f32.partialorder %v870, 8.507059e+37
  %v872 = vand.u32 %v817, 2147483648
  %v873 = vor.u32 1.1754944e-38, %v872
  %v874 = vsel %vm871, %v873, %v869
  %v875 = vmul.f32 1.0, %v874
  %v876 = vrcp.pop %v818
  %v877 = vmul.f32 %v818, %v876
  %v878 = vsub.f32 1.0, %v877
  %v879 = vmul.f32 %v876, %v878
  %v880 = vadd.f32 %v876, %v879
  %vm881 = vweird.f32 %v818
  %vm882 = vweird.f32 %v876
  %vm883 = vmor %vm881, %vm882
  %v884 = vsel %vm883, %v876, %v880
  %v885 = vand.u32 2147483647, %v818
  %vm886 = vcmp.eq.f32.partialorder %v885, 8.507059e+37
  %v887 = vand.u32 %v818, 2147483648
  %v888 = vor.u32 1.1754944e-38, %v887
  %v889 = vsel %vm886, %v888, %v884
  %v890 = vmul.f32 1.0, %v889
  %v891 = vrcp.pop %v819
  %v892 = vmul.f32 %v819, %v891
  %v893 = vsub.f32 1.0, %v892
  %v894 = vmul.f32 %v891, %v893
  %v895 = vadd.f32 %v891, %v894
  %vm896 = vweird.f32 %v819
  %vm897 = vweird.f32 %v891
  %vm898 = vmor %vm896, %vm897
  %v899 = vsel %vm898, %v891, %v895
  %v900 = vand.u32 2147483647, %v819
  %vm901 = vcmp.eq.f32.partialorder %v900, 8.507059e+37
  %v902 = vand.u32 %v819, 2147483648
  %v903 = vor.u32 1.1754944e-38, %v902
  %v904 = vsel %vm901, %v903, %v899
  %v905 = vmul.f32 1.0, %v904
  %v906 = vrcp.pop %v820
  %v907 = vmul.f32 %v820, %v906
  %v908 = vsub.f32 1.0, %v907
  %v909 = vmul.f32 %v906, %v908
  %v910 = vadd.f32 %v906, %v909
  %vm911 = vweird.f32 %v820
  %vm912 = vweird.f32 %v906
  %vm913 = vmor %vm911, %vm912
  %v914 = vsel %vm913, %v906, %v910
  %v915 = vand.u32 2147483647, %v820
  %vm916 = vcmp.eq.f32.partialorder %v915, 8.507059e+37
  %v917 = vand.u32 %v820, 2147483648
  %v918 = vor.u32 1.1754944e-38, %v917
  %v919 = vsel %vm916, %v918, %v914
  %v920 = vmul.f32 1.0, %v919
  %v921 = vrcp.pop %v821
  %v922 = vmul.f32 %v821, %v921
  %v923 = vsub.f32 1.0, %v922
  %v924 = vmul.f32 %v921, %v923
  %v925 = vadd.f32 %v921, %v924
  %vm926 = vweird.f32 %v821
  %vm927 = vweird.f32 %v921
  %vm928 = vmor %vm926, %vm927
  %v929 = vsel %vm928, %v921, %v925
  %v930 = vand.u32 2147483647, %v821
  %vm931 = vcmp.eq.f32.partialorder %v930, 8.507059e+37
  %v932 = vand.u32 %v821, 2147483648
  %v933 = vor.u32 1.1754944e-38, %v932
  %v934 = vsel %vm931, %v933, %v929
  %v935 = vmul.f32 1.0, %v934
  %v936 = vrcp.pop %v822
  %v937 = vmul.f32 %v822, %v936
  %v938 = vsub.f32 1.0, %v937
  %v939 = vmul.f32 %v936, %v938
  %v940 = vadd.f32 %v936, %v939
  %vm941 = vweird.f32 %v822
  %vm942 = vweird.f32 %v936
  %vm943 = vmor %vm941, %vm942
  %v944 = vsel %vm943, %v936, %v940
  %v945 = vand.u32 2147483647, %v822
  %vm946 = vcmp.eq.f32.partialorder %v945, 8.507059e+37
  %v947 = vand.u32 %v822, 2147483648
  %v948 = vor.u32 1.1754944e-38, %v947
  %v949 = vsel %vm946, %v948, %v944
  %v950 = vmul.f32 1.0, %v949
  %v951 = vrcp.pop %v823
  %v952 = vmul.f32 %v823, %v951
  %v953 = vsub.f32 1.0, %v952
  %v954 = vmul.f32 %v951, %v953
  %v955 = vadd.f32 %v951, %v954
  %vm956 = vweird.f32 %v823
  %vm957 = vweird.f32 %v951
  %vm958 = vmor %vm956, %vm957
  %v959 = vsel %vm958, %v951, %v955
  %v960 = vand.u32 2147483647, %v823
  %vm961 = vcmp.eq.f32.partialorder %v960, 8.507059e+37
  %v962 = vand.u32 %v823, 2147483648
  %v963 = vor.u32 1.1754944e-38, %v962
  %v964 = vsel %vm961, %v963, %v959
  %v965 = vmul.f32 1.0, %v964
  %v966 = vrcp.pop %v824
  %v967 = vmul.f32 %v824, %v966
  %v968 = vsub.f32 1.0, %v967
  %v969 = vmul.f32 %v966, %v968
  %v970 = vadd.f32 %v966, %v969
  %vm971 = vweird.f32 %v824
  %vm972 = vweird.f32 %v966
  %vm973 = vmor %vm971, %vm972
  %v974 = vsel %vm973, %v966, %v970
  %v975 = vand.u32 2147483647, %v824
  %vm976 = vcmp.eq.f32.partialorder %v975, 8.507059e+37
  %v977 = vand.u32 %v824, 2147483648
  %v978 = vor.u32 1.1754944e-38, %v977
  %v979 = vsel %vm976, %v978, %v974
  %v980 = vmul.f32 1.0, %v979
  %v981 = vrcp.pop %v825
  %v982 = vmul.f32 %v825, %v981
  %v983 = vsub.f32 1.0, %v982
  %v984 = vmul.f32 %v981, %v983
  %v985 = vadd.f32 %v981, %v984
  %vm986 = vweird.f32 %v825
  %vm987 = vweird.f32 %v981
  %vm988 = vmor %vm986, %vm987
  %v989 = vsel %vm988, %v981, %v985
  %v990 = vand.u32 2147483647, %v825
  %vm991 = vcmp.eq.f32.partialorder %v990, 8.507059e+37
  %v992 = vand.u32 %v825, 2147483648
  %v993 = vor.u32 1.1754944e-38, %v992
  %v994 = vsel %vm991, %v993, %v989
  %v995 = vmul.f32 1.0, %v994
  %v996 = vrcp.pop %v826
  %v997 = vmul.f32 %v826, %v996
  %v998 = vsub.f32 1.0, %v997
  %v999 = vmul.f32 %v996, %v998
  %v1000 = vadd.f32 %v996, %v999
  %vm1001 = vweird.f32 %v826
  %vm1002 = vweird.f32 %v996
  %vm1003 = vmor %vm1001, %vm1002
  %v1004 = vsel %vm1003, %v996, %v1000
  %v1005 = vand.u32 2147483647, %v826
  %vm1006 = vcmp.eq.f32.partialorder %v1005, 8.507059e+37
  %v1007 = vand.u32 %v826, 2147483648
  %v1008 = vor.u32 1.1754944e-38, %v1007
  %v1009 = vsel %vm1006, %v1008, %v1004
  %v1010 = vmul.f32 1.0, %v1009
  %v1011 = vrcp.pop %v827
  %v1012 = vmul.f32 %v827, %v1011
  %v1013 = vsub.f32 1.0, %v1012
  %v1014 = vmul.f32 %v1011, %v1013
  %v1015 = vadd.f32 %v1011, %v1014
  %vm1016 = vweird.f32 %v827
  %vm1017 = vweird.f32 %v1011
  %vm1018 = vmor %vm1016, %vm1017
  %v1019 = vsel %vm1018, %v1011, %v1015
  %v1020 = vand.u32 2147483647, %v827
  %vm1021 = vcmp.eq.f32.partialorder %v1020, 8.507059e+37
  %v1022 = vand.u32 %v827, 2147483648
  %v1023 = vor.u32 1.1754944e-38, %v1022
  %v1024 = vsel %vm1021, %v1023, %v1019
  %v1025 = vmul.f32 1.0, %v1024
  %v1026 = vrcp.pop %v828
  %v1027 = vmul.f32 %v828, %v1026
  %v1028 = vsub.f32 1.0, %v1027
  %v1029 = vmul.f32 %v1026, %v1028
  %v1030 = vadd.f32 %v1026, %v1029
  %vm1031 = vweird.f32 %v828
  %vm1032 = vweird.f32 %v1026
  %vm1033 = vmor %vm1031, %vm1032
  %v1034 = vsel %vm1033, %v1026, %v1030
  %v1035 = vand.u32 2147483647, %v828
  %vm1036 = vcmp.eq.f32.partialorder %v1035, 8.507059e+37
  %v1037 = vand.u32 %v828, 2147483648
  %v1038 = vor.u32 1.1754944e-38, %v1037
  %v1039 = vsel %vm1036, %v1038, %v1034
  %v1040 = vmul.f32 1.0, %v1039
  %v1041 = vrcp.pop %v829
  %v1042 = vmul.f32 %v829, %v1041
  %v1043 = vsub.f32 1.0, %v1042
  %v1044 = vmul.f32 %v1041, %v1043
  %v1045 = vadd.f32 %v1041, %v1044
  %vm1046 = vweird.f32 %v829
  %vm1047 = vweird.f32 %v1041
  %vm1048 = vmor %vm1046, %vm1047
  %v1049 = vsel %vm1048, %v1041, %v1045
  %v1050 = vand.u32 2147483647, %v829
  %vm1051 = vcmp.eq.f32.partialorder %v1050, 8.507059e+37
  %v1052 = vand.u32 %v829, 2147483648
  %v1053 = vor.u32 1.1754944e-38, %v1052
  %v1054 = vsel %vm1051, %v1053, %v1049
  %v1055 = vmul.f32 1.0, %v1054
  %v1056 = vrcp.pop %v830
  %v1057 = vmul.f32 %v830, %v1056
  %v1058 = vsub.f32 1.0, %v1057
  %v1059 = vmul.f32 %v1056, %v1058
  %v1060 = vadd.f32 %v1056, %v1059
  %vm1061 = vweird.f32 %v830
  %vm1062 = vweird.f32 %v1056
  %vm1063 = vmor %vm1061, %vm1062
  %v1064 = vsel %vm1063, %v1056, %v1060
  %v1065 = vand.u32 2147483647, %v830
  %vm1066 = vcmp.eq.f32.partialorder %v1065, 8.507059e+37
  %v1067 = vand.u32 %v830, 2147483648
  %v1068 = vor.u32 1.1754944e-38, %v1067
  %v1069 = vsel %vm1066, %v1068, %v1064
  %v1070 = vmul.f32 1.0, %v1069
  %v1071 = vmul.f32 %v14, %v589
  %v1072 = vmul.f32 %v15, %v604
  %v1073 = vmul.f32 %v16, %v619
  %v1074 = vmul.f32 %v17, %v634
  %v1075 = vmul.f32 %v18, %v649
  %v1076 = vmul.f32 %v19, %v664
  %v1077 = vmul.f32 %v20, %v679
  %v1078 = vmul.f32 %v21, %v694
  %v1079 = vmul.f32 %v22, %v709
  %v1080 = vmul.f32 %v23, %v724
  %v1081 = vmul.f32 %v24, %v739
  %v1082 = vmul.f32 %v25, %v754
  %v1083 = vmul.f32 %v26, %v769
  %v1084 = vmul.f32 %v27, %v784
  %v1085 = vmul.f32 %v28, %v799
  %v1086 = vmul.f32 %v29, %v814
  %v1087 = vmul.f32 %v30, %v845
  %v1088 = vmul.f32 %v31, %v860
  %v1089 = vmul.f32 %v32, %v875
  %v1090 = vmul.f32 %v33, %v890
  %v1091 = vmul.f32 %v34, %v905
  %v1092 = vmul.f32 %v35, %v920
  %v1093 = vmul.f32 %v36, %v935
  %v1094 = vmul.f32 %v37, %v950
  %v1095 = vmul.f32 %v38, %v965
  %v1096 = vmul.f32 %v39, %v980
  %v1097 = vmul.f32 %v40, %v995
  %v1098 = vmul.f32 %v41, %v1010
  %v1099 = vmul.f32 %v42, %v1025
  %v1100 = vmul.f32 %v43, %v1040
  %v1101 = vmul.f32 %v44, %v1055
  %v1102 = vmul.f32 %v45, %v1070
  %v1103 = vpack.c.bf16 %v1071, %v1071
  %v1104 = vpack.c.bf16 %v1072, %v1072
  %v1105 = vpack.c.bf16 %v1073, %v1073
  %v1106 = vpack.c.bf16 %v1074, %v1074
  %v1107 = vpack.c.bf16 %v1075, %v1075
  %v1108 = vpack.c.bf16 %v1076, %v1076
  %v1109 = vpack.c.bf16 %v1077, %v1077
  %v1110 = vpack.c.bf16 %v1078, %v1078
  %v1111 = vpack.c.bf16 %v1079, %v1079
  %v1112 = vpack.c.bf16 %v1080, %v1080
  %v1113 = vpack.c.bf16 %v1081, %v1081
  %v1114 = vpack.c.bf16 %v1082, %v1082
  %v1115 = vpack.c.bf16 %v1083, %v1083
  %v1116 = vpack.c.bf16 %v1084, %v1084
  %v1117 = vpack.c.bf16 %v1085, %v1085
  %v1118 = vpack.c.bf16 %v1086, %v1086
  %vm1119 = vcmask 257024
  %1120 = vst.msk [vmem:[%s2] sm:$0xf] %vm1119, %v1103
  %1121 = vst.msk [vmem:[%s2 + $0x4] sm:$0xf] %vm1119, %v1104
  %1122 = vst.msk [vmem:[%s2 + $0x8] sm:$0xf] %vm1119, %v1105
  %1123 = vst.msk [vmem:[%s2 + $0xc] sm:$0xf] %vm1119, %v1106
  %1124 = vst.msk [vmem:[%s2 + $0x10] sm:$0xf] %vm1119, %v1107
  %1125 = vst.msk [vmem:[%s2 + $0x14] sm:$0xf] %vm1119, %v1108
  %1126 = vst.msk [vmem:[%s2 + $0x18] sm:$0xf] %vm1119, %v1109
  %1127 = vst.msk [vmem:[%s2 + $0x1c] sm:$0xf] %vm1119, %v1110
  %1128 = vst.msk [vmem:[%s2 + $0x20] sm:$0xf] %vm1119, %v1111
  %1129 = vst.msk [vmem:[%s2 + $0x24] sm:$0xf] %vm1119, %v1112
  %1130 = vst.msk [vmem:[%s2 + $0x28] sm:$0xf] %vm1119, %v1113
  %1131 = vst.msk [vmem:[%s2 + $0x2c] sm:$0xf] %vm1119, %v1114
  %1132 = vst.msk [vmem:[%s2 + $0x30] sm:$0xf] %vm1119, %v1115
  %1133 = vst.msk [vmem:[%s2 + $0x34] sm:$0xf] %vm1119, %v1116
  %1134 = vst.msk [vmem:[%s2 + $0x38] sm:$0xf] %vm1119, %v1117
  %1135 = vst.msk [vmem:[%s2 + $0x3c] sm:$0xf] %vm1119, %v1118
  %v1136 = vpack.c.bf16 %v1087, %v1087
  %v1137 = vpack.c.bf16 %v1088, %v1088
  %v1138 = vpack.c.bf16 %v1089, %v1089
  %v1139 = vpack.c.bf16 %v1090, %v1090
  %v1140 = vpack.c.bf16 %v1091, %v1091
  %v1141 = vpack.c.bf16 %v1092, %v1092
  %v1142 = vpack.c.bf16 %v1093, %v1093
  %v1143 = vpack.c.bf16 %v1094, %v1094
  %v1144 = vpack.c.bf16 %v1095, %v1095
  %v1145 = vpack.c.bf16 %v1096, %v1096
  %v1146 = vpack.c.bf16 %v1097, %v1097
  %v1147 = vpack.c.bf16 %v1098, %v1098
  %v1148 = vpack.c.bf16 %v1099, %v1099
  %v1149 = vpack.c.bf16 %v1100, %v1100
  %v1150 = vpack.c.bf16 %v1101, %v1101
  %v1151 = vpack.c.bf16 %v1102, %v1102
  %1152 = vst.msk [vmem:[%s3] sm:$0xf] %vm1119, %v1136
  %1153 = vst.msk [vmem:[%s3 + $0x4] sm:$0xf] %vm1119, %v1137
  %1154 = vst.msk [vmem:[%s3 + $0x8] sm:$0xf] %vm1119, %v1138
  %1155 = vst.msk [vmem:[%s3 + $0xc] sm:$0xf] %vm1119, %v1139
  %1156 = vst.msk [vmem:[%s3 + $0x10] sm:$0xf] %vm1119, %v1140
  %1157 = vst.msk [vmem:[%s3 + $0x14] sm:$0xf] %vm1119, %v1141
  %1158 = vst.msk [vmem:[%s3 + $0x18] sm:$0xf] %vm1119, %v1142
  %1159 = vst.msk [vmem:[%s3 + $0x1c] sm:$0xf] %vm1119, %v1143
  %1160 = vst.msk [vmem:[%s3 + $0x20] sm:$0xf] %vm1119, %v1144
  %1161 = vst.msk [vmem:[%s3 + $0x24] sm:$0xf] %vm1119, %v1145
  %1162 = vst.msk [vmem:[%s3 + $0x28] sm:$0xf] %vm1119, %v1146
  %1163 = vst.msk [vmem:[%s3 + $0x2c] sm:$0xf] %vm1119, %v1147
  %1164 = vst.msk [vmem:[%s3 + $0x30] sm:$0xf] %vm1119, %v1148
  %1165 = vst.msk [vmem:[%s3 + $0x34] sm:$0xf] %vm1119, %v1149
  %1166 = vst.msk [vmem:[%s3 + $0x38] sm:$0xf] %vm1119, %v1150
  %1167 = vst.msk [vmem:[%s3 + $0x3c] sm:$0xf] %vm1119, %v1151
  %v1168 = vmul.f32 %v1071, %v1087
  %v1169 = vmul.f32 %v1072, %v1088
  %v1170 = vmul.f32 %v1073, %v1089
  %v1171 = vmul.f32 %v1074, %v1090
  %v1172 = vmul.f32 %v1075, %v1091
  %v1173 = vmul.f32 %v1076, %v1092
  %v1174 = vmul.f32 %v1077, %v1093
  %v1175 = vmul.f32 %v1078, %v1094
  %v1176 = vmul.f32 %v1079, %v1095
  %v1177 = vmul.f32 %v1080, %v1096
  %v1178 = vmul.f32 %v1081, %v1097
  %v1179 = vmul.f32 %v1082, %v1098
  %v1180 = vmul.f32 %v1083, %v1099
  %v1181 = vmul.f32 %v1084, %v1100
  %v1182 = vmul.f32 %v1085, %v1101
  %v1183 = vmul.f32 %v1086, %v1102
  %v1184 = vsel %vm62, %v1168, 0.0
  %1185 = vadd.xlane.f32.xlu0 %v1184
  %v1186 = vpop.xlane.xlu0 %1185
  %v1187 = vsel %vm62, %v1169, 0.0
  %1188 = vadd.xlane.f32.xlu0 %v1187
  %v1189 = vpop.xlane.xlu0 %1188
  %v1190 = vsel %vm62, %v1170, 0.0
  %1191 = vadd.xlane.f32.xlu0 %v1190
  %v1192 = vpop.xlane.xlu0 %1191
  %v1193 = vsel %vm62, %v1171, 0.0
  %1194 = vadd.xlane.f32.xlu0 %v1193
  %v1195 = vpop.xlane.xlu0 %1194
  %v1196 = vsel %vm62, %v1172, 0.0
  %1197 = vadd.xlane.f32.xlu0 %v1196
  %v1198 = vpop.xlane.xlu0 %1197
  %v1199 = vsel %vm62, %v1173, 0.0
  %1200 = vadd.xlane.f32.xlu0 %v1199
  %v1201 = vpop.xlane.xlu0 %1200
  %v1202 = vsel %vm62, %v1174, 0.0
  %1203 = vadd.xlane.f32.xlu0 %v1202
  %v1204 = vpop.xlane.xlu0 %1203
  %v1205 = vsel %vm62, %v1175, 0.0
  %1206 = vadd.xlane.f32.xlu0 %v1205
  %v1207 = vpop.xlane.xlu0 %1206
  %v1208 = vsel %vm62, %v1176, 0.0
  %1209 = vadd.xlane.f32.xlu0 %v1208
  %v1210 = vpop.xlane.xlu0 %1209
  %v1211 = vsel %vm62, %v1177, 0.0
  %1212 = vadd.xlane.f32.xlu0 %v1211
  %v1213 = vpop.xlane.xlu0 %1212
  %v1214 = vsel %vm62, %v1178, 0.0
  %1215 = vadd.xlane.f32.xlu0 %v1214
  %v1216 = vpop.xlane.xlu0 %1215
  %v1217 = vsel %vm62, %v1179, 0.0
  %1218 = vadd.xlane.f32.xlu0 %v1217
  %v1219 = vpop.xlane.xlu0 %1218
  %v1220 = vsel %vm62, %v1180, 0.0
  %1221 = vadd.xlane.f32.xlu0 %v1220
  %v1222 = vpop.xlane.xlu0 %1221
  %v1223 = vsel %vm62, %v1181, 0.0
  %1224 = vadd.xlane.f32.xlu0 %v1223
  %v1225 = vpop.xlane.xlu0 %1224
  %v1226 = vsel %vm62, %v1182, 0.0
  %1227 = vadd.xlane.f32.xlu0 %v1226
  %v1228 = vpop.xlane.xlu0 %1227
  %v1229 = vsel %vm62, %v1183, 0.0
  %1230 = vadd.xlane.f32.xlu0 %v1229
  %v1231 = vpop.xlane.xlu0 %1230
  %vm1232 = vcmask 7168
  %1233 = vst.msk [vmem:[%s4] sm:$0xff] %vm1232, %v1186
  %1234 = vst.msk [vmem:[%s4 + $0x8] sm:$0xff] %vm1232, %v1189
  %1235 = vst.msk [vmem:[%s4 + $0x10] sm:$0xff] %vm1232, %v1192
  %1236 = vst.msk [vmem:[%s4 + $0x18] sm:$0xff] %vm1232, %v1195
  %1237 = vst.msk [vmem:[%s4 + $0x20] sm:$0xff] %vm1232, %v1198
  %1238 = vst.msk [vmem:[%s4 + $0x28] sm:$0xff] %vm1232, %v1201
  %1239 = vst.msk [vmem:[%s4 + $0x30] sm:$0xff] %vm1232, %v1204
  %1240 = vst.msk [vmem:[%s4 + $0x38] sm:$0xff] %vm1232, %v1207
  %1241 = vst.msk [vmem:[%s4 + $0x40] sm:$0xff] %vm1232, %v1210
  %1242 = vst.msk [vmem:[%s4 + $0x48] sm:$0xff] %vm1232, %v1213
  %1243 = vst.msk [vmem:[%s4 + $0x50] sm:$0xff] %vm1232, %v1216
  %1244 = vst.msk [vmem:[%s4 + $0x58] sm:$0xff] %vm1232, %v1219
  %1245 = vst.msk [vmem:[%s4 + $0x60] sm:$0xff] %vm1232, %v1222
  %1246 = vst.msk [vmem:[%s4 + $0x68] sm:$0xff] %vm1232, %v1225
  %1247 = vst.msk [vmem:[%s4 + $0x70] sm:$0xff] %vm1232, %v1228
  %1248 = vst.msk [vmem:[%s4 + $0x78] sm:$0xff] %vm1232, %v1231
  // Predicated region
  $region10: #{tpu_custom_call.1} parent=0 // pred_check
    _
  $region11: #{tpu_custom_call.1} parent=0 // pred_check_branch
    %1250 = sbr.rel (0) target = $region13
  $region12: #{tpu_custom_call.1} parent=0 // pred_region
    _
  $region13: #{tpu_custom_call.1} parent=0 // pred_fallthru
    _
  // Predicated region
  $region14: #{tpu_custom_call.1} parent=0 // pred_check
    _
  $region15: #{tpu_custom_call.1} parent=0 // pred_check_branch
    %1252 = sbr.rel (0) target = $region17
  $region16: #{tpu_custom_call.1} parent=0 // pred_region
    _
  $region17: #{tpu_custom_call.1} parent=0 // pred_fallthru
    _
  // Predicated region
  $region18: #{tpu_custom_call.1} parent=0 // pred_check
    _
  $region19: #{tpu_custom_call.1} parent=0 // pred_check_branch
    %1254 = sbr.rel (0) target = $region21
  $region20: #{tpu_custom_call.1} parent=0 // pred_region
    _
  $region21: #{tpu_custom_call.1} parent=0 // pred_fallthru
    _
  // Predicated region
  $region22: #{tpu_custom_call.1} parent=0 // pred_check
    _
  $region23: #{tpu_custom_call.1} parent=0 // pred_check_branch
    %1256 = sbr.rel (0) target = $region25
  $region24: #{tpu_custom_call.1} parent=0 // pred_region
    _
  $region25: #{tpu_custom_call.1} parent=0 // pred_fallthru
    _
  // Predicated region
  $region26: #{tpu_custom_call.1} parent=0 // pred_check
    _
  $region27: #{tpu_custom_call.1} parent=0 // pred_check_branch
    %1258 = sbr.rel (0) target = $region29
  $region28: #{tpu_custom_call.1} parent=0 // pred_region
    _
  $region29: #{tpu_custom_call.1} parent=0 // pred_fallthru
    _
  // Predicated region
  $region30: #{tpu_custom_call.1} parent=0 // pred_check
    _
  $region31: #{tpu_custom_call.1} parent=0 // pred_check_branch
    %1260 = sbr.rel (0) target = $region33
  $region32: #{tpu_custom_call.1} parent=0 // pred_region
    _
  $region33: #{tpu_custom_call.1} parent=0 // pred_fallthru
    _

</llo_original>
